<compile_context>
chip_gen: v5e
topology: v5e:2x2
jax: 0.10.0
libtpu: 0.0.40
codegen_flags: <defaults>
</compile_context>

<pallas_src>
import functools

import jax
import jax.numpy as jnp
from jax.experimental import pallas as pl
from jax.experimental.pallas import tpu as pltpu

LANES = 128  # lane-padded feature width for every layer


def _actor_kernel(x_ref, w_ref, b_ref, out_ref, *, continuous: bool,
                  output_size: int):
    P = LANES
    x = x_ref[...]  # [TB, P] f32 (already padded & f32 in the wrapper)

    # layer1..layer3: Linear + ReLU, reading aligned 128-wide slices of the
    # packed weight/bias slabs (static, lane-aligned slices).
    h = jnp.dot(x, w_ref[:, 0 * P:1 * P],
                preferred_element_type=jnp.float32) + b_ref[:, 0 * P:1 * P]
    h = jnp.maximum(h, 0.0)
    h = jnp.dot(h, w_ref[:, 1 * P:2 * P],
                preferred_element_type=jnp.float32) + b_ref[:, 1 * P:2 * P]
    h = jnp.maximum(h, 0.0)
    h = jnp.dot(h, w_ref[:, 2 * P:3 * P],
                preferred_element_type=jnp.float32) + b_ref[:, 2 * P:3 * P]
    h = jnp.maximum(h, 0.0)
    logits = jnp.dot(h, w_ref[:, 3 * P:4 * P],
                     preferred_element_type=jnp.float32) + b_ref[:, 3 * P:4 * P]

    if continuous:
        # 2*sigmoid(z) - 1 == tanh(z/2); padded lanes give tanh(0)=0, sliced off.
        out = jnp.tanh(0.5 * logits)
    else:
        # Numerically stable softmax over the real output lanes only.
        lane = jax.lax.broadcasted_iota(jnp.int32, logits.shape, 1)
        valid = lane < output_size
        masked = jnp.where(valid, logits, jnp.full_like(logits, -1e30))
        m = jnp.max(masked, axis=-1, keepdims=True)
        e = jnp.where(valid, jnp.exp(masked - m), 0.0)
        denom = jnp.sum(e, axis=-1, keepdims=True)
        out = e * pl.reciprocal(denom, approx=True)

    out_ref[...] = out.astype(out_ref.dtype)


def _pad2(a, rows, cols):
    return jnp.pad(a, ((0, rows - a.shape[0]), (0, cols - a.shape[1])))


def actor_forward(x, params, *, continuous=False):
    """Actor forward pass as one Pallas call.

    x:      [B, input_size] float
    params: dict with w1,b1,w2,b2,w3,b3,w4,b4 (weights [in,out], biases [1,out])
    """
    P = LANES
    B, input_size = x.shape
    output_size = params["w4"].shape[1]

    # ---- pack + lane-pad weights/biases into single slabs -------------------
    # NOTE: on v6e/v7x these slabs could be stored bf16 (f32 accumulate) to
    # halve DMA bytes; kept f32 here so the same code is optimal on v5e too.
    w_slab = jnp.concatenate(
        [_pad2(params["w1"].astype(jnp.float32), P, P),
         _pad2(params["w2"].astype(jnp.float32), P, P),
         _pad2(params["w3"].astype(jnp.float32), P, P),
         _pad2(params["w4"].astype(jnp.float32), P, P)], axis=1)   # [P, 4P]
    b_slab = jnp.concatenate(
        [_pad2(params["b1"].astype(jnp.float32), 1, P),
         _pad2(params["b2"].astype(jnp.float32), 1, P),
         _pad2(params["b3"].astype(jnp.float32), 1, P),
         _pad2(params["b4"].astype(jnp.float32), 1, P)], axis=1)   # [1, 4P]

    # ---- pad batch (sublane multiple of 8) and pick a batch tile ------------
    B8 = ((B + 7) // 8) * 8
    TB = min(512, B8)                     # 512-row tiles once batch is large
    B_pad = ((B8 + TB - 1) // TB) * TB
    x_pad = _pad2(x.astype(jnp.float32), B_pad, P)                 # [B_pad, P]

    grid = (B_pad // TB,)

    flops = 2 * B_pad * (4 * P * P)                      # 4 padded matmuls
    bytes_accessed = 4 * (x_pad.size + w_slab.size + b_slab.size + B_pad * P)
    transcendentals = B_pad * P                          # exp or tanh per lane

    kernel = functools.partial(_actor_kernel, continuous=continuous,
                               output_size=output_size)

    out_pad = pl.pallas_call(
        kernel,
        out_shape=jax.ShapeDtypeStruct((B_pad, P), jnp.float32),
        grid=grid,
        in_specs=[
            pl.BlockSpec((TB, P), lambda i: (i, 0)),        # x: tiled over batch
            pl.BlockSpec((P, 4 * P), lambda i: (0, 0)),     # weights: resident
            pl.BlockSpec((1, 4 * P), lambda i: (0, 0)),     # biases: resident
        ],
        out_specs=pl.BlockSpec((TB, P), lambda i: (i, 0)),  # lane-dense output
        compiler_params=pltpu.CompilerParams(
            dimension_semantics=("parallel",)),             # 2 TCs on v7x
        cost_estimate=pl.CostEstimate(flops=flops,
                                      transcendentals=transcendentals,
                                      bytes_accessed=bytes_accessed),
    )(x_pad, w_slab, b_slab)

    return out_pad[:B, :output_size]


def init_actor_params(key, input_size, output_size, hidden_size=12):
    """PyTorch-Linear-style init: U(-1/sqrt(fan_in), 1/sqrt(fan_in))."""
    def linear(k, fan_in, fan_out):
        kw, kb = jax.random.split(k)
        bound = 1.0 / jnp.sqrt(jnp.float32(fan_in))
        w = jax.random.uniform(kw, (fan_in, fan_out), jnp.float32, -bound, bound)
        b = jax.random.uniform(kb, (1, fan_out), jnp.float32, -bound, bound)
        return w, b

    k1, k2, k3, k4 = jax.random.split(key, 4)
    w1, b1 = linear(k1, input_size, hidden_size)
    w2, b2 = linear(k2, hidden_size, hidden_size)
    w3, b3 = linear(k3, hidden_size, hidden_size)
    w4, b4 = linear(k4, hidden_size, output_size)
    return dict(w1=w1, b1=b1, w2=w2, b2=b2, w3=w3, b3=b3, w4=w4, b4=b4)


def actor_forward_ref(x, params, *, continuous=False):
    """Pure-JAX reference for correctness checking."""
    h = jax.nn.relu(x @ params["w1"] + params["b1"])
    h = jax.nn.relu(h @ params["w2"] + params["b2"])
    h = jax.nn.relu(h @ params["w3"] + params["b3"])
    logits = h @ params["w4"] + params["b4"]
    if continuous:
        return 2.0 * jax.nn.sigmoid(logits) - 1.0
    return jax.nn.softmax(logits, axis=-1)


# TODO(synk): select_action() (Categorical/Normal sampling + rejection loop) is
# host-side torch.distributions logic, not part of forward(); not ported.

if __name__ == "__main__":
    key = jax.random.PRNGKey(0)
    k_params, k_x, k_x2 = jax.random.split(key, 3)

    input_size, output_size, hidden_size = 8, 4, 12
    batch = 2

    params = init_actor_params(k_params, input_size, output_size, hidden_size)
    x = jax.random.normal(k_x, (batch, input_size), dtype=jnp.float32)

    # Discrete (softmax) head — the default configuration of Actor.
    out = jax.block_until_ready(actor_forward(x, params, continuous=False))
    ref = actor_forward_ref(x, params, continuous=False)
    assert out.shape == (batch, output_size)
    # approx reciprocal in the softmax -> slightly relaxed tolerance
    assert jnp.allclose(out, ref, atol=2e-3, rtol=2e-3), (out, ref)
    assert jnp.allclose(jnp.sum(out, axis=-1), 1.0, atol=5e-3)

    # Continuous (sigmoid -> 2x-1 == tanh(z/2)) head.
    out_c = jax.block_until_ready(actor_forward(x, params, continuous=True))
    ref_c = actor_forward_ref(x, params, continuous=True)
    assert jnp.allclose(out_c, ref_c, atol=1e-4, rtol=1e-4), (out_c, ref_c)

    # Larger batch: exercises batch padding + multi-step (parallel) grid.
    xb = jax.random.normal(k_x2, (600, input_size), dtype=jnp.float32)
    out_b = jax.block_until_ready(actor_forward(xb, params, continuous=False))
    ref_b = actor_forward_ref(xb, params, continuous=False)
    assert out_b.shape == (600, output_size)
    assert jnp.allclose(out_b, ref_b, atol=2e-3, rtol=2e-3)

    print("KERNEL_OK")
</pallas_src>

<mosaic_0001>
module attributes {stable_mosaic.version = 11 : i64} {
  func.func @_actor_kernel(%arg0: i32, %arg1: memref<8x128xf32, #tpu.memory_space<vmem>>, %arg2: memref<128x512xf32, #tpu.memory_space<vmem>>, %arg3: memref<1x512xf32, #tpu.memory_space<vmem>>, %arg4: memref<8x128xf32, #tpu.memory_space<vmem>>) attributes {dimension_semantics = [#tpu.dimension_semantics<parallel>], iteration_bounds = array<i64: 1>, scalar_prefetch = 0 : i64, scratch_operands = 0 : i64, tpu.core_type = #tpu.core_type<tc>, window_params = [{transform_indices = @transform_0, window_bounds = array<i64: 8, 128>}, {pipeline_mode = #tpu.pipeline_mode<synchronous>, transform_indices = @transform_1, window_bounds = array<i64: 128, 512>}, {pipeline_mode = #tpu.pipeline_mode<synchronous>, transform_indices = @transform_2, window_bounds = array<i64: 1, 512>}, {transform_indices = @transform_3, window_bounds = array<i64: 8, 128>}]} {
    %c0 = arith.constant 0 : index
    %c0_0 = arith.constant 0 : index
    %0 = vector.load %arg1[%c0, %c0_0] : memref<8x128xf32, #tpu.memory_space<vmem>>, vector<8x128xf32>
    %c0_1 = arith.constant 0 : index
    %c0_2 = arith.constant 0 : index
    %1 = vector.load %arg2[%c0_1, %c0_2] : memref<128x512xf32, #tpu.memory_space<vmem>>, vector<128x128xf32>
    %cst = arith.constant dense<0.000000e+00> : vector<8x128xf32>
    %2 = tpu.matmul %0, %1, %cst {dimension_numbers = #tpu.dot_dimension_numbers<[1], [0], [0], [1], [0, 0, 1, 1], [], []>} : vector<8x128xf32>, vector<128x128xf32>, vector<8x128xf32> -> vector<8x128xf32>
    %c0_3 = arith.constant 0 : index
    %c0_4 = arith.constant 0 : index
    %3 = vector.load %arg3[%c0_3, %c0_4] : memref<1x512xf32, #tpu.memory_space<vmem>>, vector<1x128xf32>
    %4 = vector.broadcast %3 : vector<1x128xf32> to vector<8x128xf32>
    %5 = arith.addf %2, %4 : vector<8x128xf32>
    %cst_5 = arith.constant 0.000000e+00 : f32
    %6 = vector.broadcast %cst_5 : f32 to vector<8x128xf32>
    %7 = arith.maximumf %5, %6 : vector<8x128xf32>
    %c0_6 = arith.constant 0 : index
    %c128 = arith.constant 128 : index
    %8 = vector.load %arg2[%c0_6, %c128] : memref<128x512xf32, #tpu.memory_space<vmem>>, vector<128x128xf32>
    %cst_7 = arith.constant dense<0.000000e+00> : vector<8x128xf32>
    %9 = tpu.matmul %7, %8, %cst_7 {dimension_numbers = #tpu.dot_dimension_numbers<[1], [0], [0], [1], [0, 0, 1, 1], [], []>} : vector<8x128xf32>, vector<128x128xf32>, vector<8x128xf32> -> vector<8x128xf32>
    %c0_8 = arith.constant 0 : index
    %c128_9 = arith.constant 128 : index
    %10 = vector.load %arg3[%c0_8, %c128_9] : memref<1x512xf32, #tpu.memory_space<vmem>>, vector<1x128xf32>
    %11 = vector.broadcast %10 : vector<1x128xf32> to vector<8x128xf32>
    %12 = arith.addf %9, %11 : vector<8x128xf32>
    %cst_10 = arith.constant 0.000000e+00 : f32
    %13 = vector.broadcast %cst_10 : f32 to vector<8x128xf32>
    %14 = arith.maximumf %12, %13 : vector<8x128xf32>
    %c0_11 = arith.constant 0 : index
    %c256 = arith.constant 256 : index
    %15 = vector.load %arg2[%c0_11, %c256] : memref<128x512xf32, #tpu.memory_space<vmem>>, vector<128x128xf32>
    %cst_12 = arith.constant dense<0.000000e+00> : vector<8x128xf32>
    %16 = tpu.matmul %14, %15, %cst_12 {dimension_numbers = #tpu.dot_dimension_numbers<[1], [0], [0], [1], [0, 0, 1, 1], [], []>} : vector<8x128xf32>, vector<128x128xf32>, vector<8x128xf32> -> vector<8x128xf32>
    %c0_13 = arith.constant 0 : index
    %c256_14 = arith.constant 256 : index
    %17 = vector.load %arg3[%c0_13, %c256_14] : memref<1x512xf32, #tpu.memory_space<vmem>>, vector<1x128xf32>
    %18 = vector.broadcast %17 : vector<1x128xf32> to vector<8x128xf32>
    %19 = arith.addf %16, %18 : vector<8x128xf32>
    %cst_15 = arith.constant 0.000000e+00 : f32
    %20 = vector.broadcast %cst_15 : f32 to vector<8x128xf32>
    %21 = arith.maximumf %19, %20 : vector<8x128xf32>
    %c0_16 = arith.constant 0 : index
    %c384 = arith.constant 384 : index
    %22 = vector.load %arg2[%c0_16, %c384] : memref<128x512xf32, #tpu.memory_space<vmem>>, vector<128x128xf32>
    %cst_17 = arith.constant dense<0.000000e+00> : vector<8x128xf32>
    %23 = tpu.matmul %21, %22, %cst_17 {dimension_numbers = #tpu.dot_dimension_numbers<[1], [0], [0], [1], [0, 0, 1, 1], [], []>} : vector<8x128xf32>, vector<128x128xf32>, vector<8x128xf32> -> vector<8x128xf32>
    %c0_18 = arith.constant 0 : index
    %c384_19 = arith.constant 384 : index
    %24 = vector.load %arg3[%c0_18, %c384_19] : memref<1x512xf32, #tpu.memory_space<vmem>>, vector<1x128xf32>
    %25 = vector.broadcast %24 : vector<1x128xf32> to vector<8x128xf32>
    %26 = arith.addf %23, %25 : vector<8x128xf32>
    %27 = tpu.iota {dimensions = array<i32: 1>} : vector<8x128xi32>
    %c4_i32 = arith.constant 4 : i32
    %28 = vector.broadcast %c4_i32 : i32 to vector<8x128xi32>
    %29 = arith.cmpi slt, %27, %28 : vector<8x128xi32>
    %cst_20 = arith.constant -1.000000e+30 : f32
    %30 = vector.broadcast %cst_20 : f32 to vector<8x128xf32>
    %31 = arith.select %29, %26, %30 : vector<8x128xi1>, vector<8x128xf32>
    %cst_21 = arith.constant dense<0xFF800000> : vector<8xf32>
    %32 = vector.multi_reduction <maximumf>, %31, %cst_21 [1] : vector<8x128xf32> to vector<8xf32>
    %33 = vector.shape_cast %32 : vector<8xf32> to vector<8x1xf32>
    %34 = vector.broadcast %33 : vector<8x1xf32> to vector<8x128xf32>
    %35 = arith.subf %31, %34 : vector<8x128xf32>
    %36 = math.exp %35 : vector<8x128xf32>
    %cst_22 = arith.constant 0.000000e+00 : f32
    %37 = vector.broadcast %cst_22 : f32 to vector<8x128xf32>
    %38 = arith.select %29, %36, %37 : vector<8x128xi1>, vector<8x128xf32>
    %cst_23 = arith.constant dense<0.000000e+00> : vector<8xf32>
    %39 = vector.multi_reduction <add>, %38, %cst_23 [1] : vector<8x128xf32> to vector<8xf32>
    %40 = vector.shape_cast %39 : vector<8xf32> to vector<8x1xf32>
    %41 = tpu.reciprocal %40 {approx = true} : vector<8x1xf32> -> vector<8x1xf32>
    %42 = vector.broadcast %41 : vector<8x1xf32> to vector<8x128xf32>
    %43 = arith.mulf %38, %42 : vector<8x128xf32>
    %c0_24 = arith.constant 0 : index
    %c0_25 = arith.constant 0 : index
    %44 = vector.load %arg4[%c0_24, %c0_25] : memref<8x128xf32, #tpu.memory_space<vmem>>, vector<8x128xf32>
    tpu.vector_store %arg4[%c0_24, %c0_25], %43 {strides = array<i32>} : memref<8x128xf32, #tpu.memory_space<vmem>>, vector<8x128xf32>,
    return
  }
  func.func @transform_0(%arg0: i32) -> (i32, i32) {
    %c0_i32 = arith.constant 0 : i32
    %c0_i32_0 = arith.constant 0 : i32
    return %arg0, %c0_i32 : i32, i32
  }
  func.func @transform_1(%arg0: i32) -> (i32, i32) {
    %c0_i32 = arith.constant 0 : i32
    %c0_i32_0 = arith.constant 0 : i32
    %c0_i32_1 = arith.constant 0 : i32
    return %c0_i32, %c0_i32_0 : i32, i32
  }
  func.func @transform_2(%arg0: i32) -> (i32, i32) {
    %c0_i32 = arith.constant 0 : i32
    %c0_i32_0 = arith.constant 0 : i32
    %c0_i32_1 = arith.constant 0 : i32
    return %c0_i32, %c0_i32_0 : i32, i32
  }
  func.func @transform_3(%arg0: i32) -> (i32, i32) {
    %c0_i32 = arith.constant 0 : i32
    %c0_i32_0 = arith.constant 0 : i32
    return %arg0, %c0_i32 : i32, i32
  }
}

</mosaic_0001>

<llo_original>
// kernel: tpu_custom_call.1
$region0: #{tpu_custom_call.1}
  #allocation0 [shape = 'u32[]', space=smem, size = 0x4, offset = 0x4, fixed_abs, tag = 'smem constant byte address 0x4 - core index']
  #allocation1 [shape = 'u32[72,128]{1,0:T(1,128)}', space=vmem, size = 0x9000, scoped, tag = 'internal scratch']
  %s0 = inlined_call_operand.hbm [shape: f32[8,128], index: 0, kind: input, shape index: {}]
  %s1 = inlined_call_operand.hbm [shape: f32[128,512], index: 1, kind: input, shape index: {}]
  %s2 = inlined_call_operand.hbm [shape: f32[1,512], index: 2, kind: input, shape index: {}]
  %s3 = inlined_call_operand.hbm [shape: f32[8,128], index: 3, kind: output, shape index: {}]
  %s4 = sld [smem:[#allocation0]]
  $region34: #{tpu_custom_call.1} parent=0
    _
  %s6 = ssub.s32 1, %s4
  %s7 = scalar_select 0, %s6, %s4
  $region1: #{tpu_custom_call.1} parent=0
    #allocation2 [shape = 'u8[4096]{0}', space=vmem, size = 0x1000, scoped, tag = 'input window, operand 0, single buffered']
    #allocation3 [shape = 's32[1]{0}', space=sflag, size = 0x4, scoped, tag = 'scoped memory for tpu_custom_call.1']
    #allocation4 [shape = 's32[1]{0}', space=sflag, size = 0x4, scoped, tag = 'scoped memory for tpu_custom_call.1']
    #allocation5 [shape = 'u8[262144]{0}', space=vmem, size = 0x40000, scoped, tag = 'input window, operand 1, single buffered']
    #allocation6 [shape = 's32[1]{0}', space=sflag, size = 0x4, scoped, tag = 'scoped memory for tpu_custom_call.1']
    #allocation7 [shape = 'u8[2048]{0}', space=vmem, size = 0x800, scoped, tag = 'input window, operand 2, single buffered']
    #allocation8 [shape = 'u8[4096]{0}', space=vmem, size = 0x1000, scoped, tag = 'output window, operand 0, single buffered']
    %8 = vsyncpa [#allocation3], 0
    %9 = vsyncpa [#allocation6], 0
    %10 = vsyncpa [#allocation4], 0
    // Predicated region
    $region2: #{tpu_custom_call.1} parent=1 // pred_check
      _
    $region3: #{tpu_custom_call.1} parent=1 // pred_check_branch
      %12 = sbr.rel (0) target = $region5
    $region4: #{tpu_custom_call.1} parent=1 // pred_region
      %14 = vsyncadd [#allocation3], 0
      %s16 = sshll.u32 %s0, 4
      %s17 = int_to_ptr.hbm [resolvable:$true] %s16
      %s18 = sshll.u32 [#allocation2], 4
      %s19 = int_to_ptr.vmem [resolvable:$true] %s18
      %21 = dma.hbm_to_vmem [thread:$0]  %s17, 128, %s19, [#allocation3]
    $region5: #{tpu_custom_call.1} parent=1 // pred_fallthru
      _
    // Predicated region
    $region6: #{tpu_custom_call.1} parent=1 // pred_check
      _
    $region7: #{tpu_custom_call.1} parent=1 // pred_check_branch
      %23 = sbr.rel (0) target = $region9
    $region8: #{tpu_custom_call.1} parent=1 // pred_region
      %25 = vsyncadd [#allocation6], 0
      %s26 = sshll.u32 %s1, 4
      %s27 = int_to_ptr.hbm [resolvable:$true] %s26
      %s28 = sshll.u32 [#allocation5], 4
      %s29 = int_to_ptr.vmem [resolvable:$true] %s28
      %34 = dma.hbm_to_vmem [thread:$0]  %s27, 8192, %s29, [#allocation6], 512, 512, 32
    $region9: #{tpu_custom_call.1} parent=1 // pred_fallthru
      _
    // Predicated region
    $region10: #{tpu_custom_call.1} parent=1 // pred_check
      _
    $region11: #{tpu_custom_call.1} parent=1 // pred_check_branch
      %36 = sbr.rel (0) target = $region13
    $region12: #{tpu_custom_call.1} parent=1 // pred_region
      %38 = vsyncadd [#allocation6], 0
      %s40 = sshll.u32 %s2, 4
      %s41 = int_to_ptr.hbm [resolvable:$true] %s40
      %s42 = sshll.u32 [#allocation7], 4
      %s43 = int_to_ptr.vmem [resolvable:$true] %s42
      %45 = dma.hbm_to_vmem [thread:$0]  %s41, 64, %s43, [#allocation6]
    $region13: #{tpu_custom_call.1} parent=1 // pred_fallthru
      _
    // Predicated region
    $region14: #{tpu_custom_call.1} parent=1 // pred_check
      _
    $region15: #{tpu_custom_call.1} parent=1 // pred_check_branch
      %47 = sbr.rel (0) target = $region17
    $region16: #{tpu_custom_call.1} parent=1 // pred_region
      %49 = dma.done [#allocation3], 128
    $region17: #{tpu_custom_call.1} parent=1 // pred_fallthru
      _
    // Predicated region
    $region18: #{tpu_custom_call.1} parent=1 // pred_check
      _
    $region19: #{tpu_custom_call.1} parent=1 // pred_check_branch
      %51 = sbr.rel (0) target = $region21
    $region20: #{tpu_custom_call.1} parent=1 // pred_region
      %53 = dma.done [#allocation6], 8192
    $region21: #{tpu_custom_call.1} parent=1 // pred_fallthru
      _
    // Predicated region
    $region22: #{tpu_custom_call.1} parent=1 // pred_check
      _
    $region23: #{tpu_custom_call.1} parent=1 // pred_check_branch
      %55 = sbr.rel (0) target = $region25
    $region24: #{tpu_custom_call.1} parent=1 // pred_region
      %57 = dma.done [#allocation6], 64
    $region25: #{tpu_custom_call.1} parent=1 // pred_fallthru
      _
    %v58 = vld [vmem:[#allocation2] sm:$0xff]
    %v59 = vld [vmem:[#allocation5] sm:$0xff]
    %v60 = vld [vmem:[#allocation5 + $0x20] sm:$0xff]
    %v61 = vld [vmem:[#allocation5 + $0x40] sm:$0xff]
    %v62 = vld [vmem:[#allocation5 + $0x60] sm:$0xff]
    %v63 = vld [vmem:[#allocation5 + $0x80] sm:$0xff]
    %v64 = vld [vmem:[#allocation5 + $0xa0] sm:$0xff]
    %v65 = vld [vmem:[#allocation5 + $0xc0] sm:$0xff]
    %v66 = vld [vmem:[#allocation5 + $0xe0] sm:$0xff]
    %v67 = vld [vmem:[#allocation5 + $0x100] sm:$0xff]
    %v68 = vld [vmem:[#allocation5 + $0x120] sm:$0xff]
    %v69 = vld [vmem:[#allocation5 + $0x140] sm:$0xff]
    %v70 = vld [vmem:[#allocation5 + $0x160] sm:$0xff]
    %v71 = vld [vmem:[#allocation5 + $0x180] sm:$0xff]
    %v72 = vld [vmem:[#allocation5 + $0x1a0] sm:$0xff]
    %v73 = vld [vmem:[#allocation5 + $0x1c0] sm:$0xff]
    %v74 = vld [vmem:[#allocation5 + $0x1e0] sm:$0xff]
    %v75 = vld [vmem:[#allocation7] sm:$0x1]
    %v77 = vperm.slane %v75, 0
    %79 = vmatpush.msra.mxu0 %v74
    %80 = vmatpush.msra.mxu0 %v73
    %81 = vmatpush.msra.mxu0 %v72
    %82 = vmatpush.msra.mxu0 %v71
    %83 = vmatpush.msra.mxu0 %v70
    %84 = vmatpush.msra.mxu0 %v69
    %85 = vmatpush.msra.mxu0 %v68
    %86 = vmatpush.msra.mxu0 %v67
    %87 = vmatpush.msra.mxu0 %v66
    %88 = vmatpush.msra.mxu0 %v65
    %89 = vmatpush.msra.mxu0 %v64
    %90 = vmatpush.msra.mxu0 %v63
    %91 = vmatpush.msra.mxu0 %v62
    %92 = vmatpush.msra.mxu0 %v61
    %93 = vmatpush.msra.mxu0 %v60
    %94 = vmatpush.msra.mxu0 %v59
    %95 = vmatmul.f32.gmra.mxu0 %v58
    %v96 = vpop.f32.mrf.mxu0
    %v97 = vadd.f32 %v77, %v96
    %98 = vdwg.mxu0
    %v99 = vmax.f32 %v97, 0.0
    %v100 = vld [vmem:[#allocation5 + $0x8] sm:$0xff]
    %v101 = vld [vmem:[#allocation5 + $0x28] sm:$0xff]
    %v102 = vld [vmem:[#allocation5 + $0x48] sm:$0xff]
    %v103 = vld [vmem:[#allocation5 + $0x68] sm:$0xff]
    %v104 = vld [vmem:[#allocation5 + $0x88] sm:$0xff]
    %v105 = vld [vmem:[#allocation5 + $0xa8] sm:$0xff]
    %v106 = vld [vmem:[#allocation5 + $0xc8] sm:$0xff]
    %v107 = vld [vmem:[#allocation5 + $0xe8] sm:$0xff]
    %v108 = vld [vmem:[#allocation5 + $0x108] sm:$0xff]
    %v109 = vld [vmem:[#allocation5 + $0x128] sm:$0xff]
    %v110 = vld [vmem:[#allocation5 + $0x148] sm:$0xff]
    %v111 = vld [vmem:[#allocation5 + $0x168] sm:$0xff]
    %v112 = vld [vmem:[#allocation5 + $0x188] sm:$0xff]
    %v113 = vld [vmem:[#allocation5 + $0x1a8] sm:$0xff]
    %v114 = vld [vmem:[#allocation5 + $0x1c8] sm:$0xff]
    %v115 = vld [vmem:[#allocation5 + $0x1e8] sm:$0xff]
    %v116 = vld [vmem:[#allocation7 + $0x1] sm:$0x1]
    %v118 = vperm.slane %v116, 0
    %120 = vmatpush.msra.mxu0 %v115
    %121 = vmatpush.msra.mxu0 %v114
    %122 = vmatpush.msra.mxu0 %v113
    %123 = vmatpush.msra.mxu0 %v112
    %124 = vmatpush.msra.mxu0 %v111
    %125 = vmatpush.msra.mxu0 %v110
    %126 = vmatpush.msra.mxu0 %v109
    %127 = vmatpush.msra.mxu0 %v108
    %128 = vmatpush.msra.mxu0 %v107
    %129 = vmatpush.msra.mxu0 %v106
    %130 = vmatpush.msra.mxu0 %v105
    %131 = vmatpush.msra.mxu0 %v104
    %132 = vmatpush.msra.mxu0 %v103
    %133 = vmatpush.msra.mxu0 %v102
    %134 = vmatpush.msra.mxu0 %v101
    %135 = vmatpush.msra.mxu0 %v100
    %136 = vmatmul.f32.gmra.mxu0 %v99
    %v137 = vpop.f32.mrf.mxu0
    %v138 = vadd.f32 %v118, %v137
    %139 = vdwg.mxu0
    %v140 = vmax.f32 %v138, 0.0
    %v141 = vld [vmem:[#allocation5 + $0x10] sm:$0xff]
    %v142 = vld [vmem:[#allocation5 + $0x30] sm:$0xff]
    %v143 = vld [vmem:[#allocation5 + $0x50] sm:$0xff]
    %v144 = vld [vmem:[#allocation5 + $0x70] sm:$0xff]
    %v145 = vld [vmem:[#allocation5 + $0x90] sm:$0xff]
    %v146 = vld [vmem:[#allocation5 + $0xb0] sm:$0xff]
    %v147 = vld [vmem:[#allocation5 + $0xd0] sm:$0xff]
    %v148 = vld [vmem:[#allocation5 + $0xf0] sm:$0xff]
    %v149 = vld [vmem:[#allocation5 + $0x110] sm:$0xff]
    %v150 = vld [vmem:[#allocation5 + $0x130] sm:$0xff]
    %v151 = vld [vmem:[#allocation5 + $0x150] sm:$0xff]
    %v152 = vld [vmem:[#allocation5 + $0x170] sm:$0xff]
    %v153 = vld [vmem:[#allocation5 + $0x190] sm:$0xff]
    %v154 = vld [vmem:[#allocation5 + $0x1b0] sm:$0xff]
    %v155 = vld [vmem:[#allocation5 + $0x1d0] sm:$0xff]
    %v156 = vld [vmem:[#allocation5 + $0x1f0] sm:$0xff]
    %v157 = vld [vmem:[#allocation7 + $0x2] sm:$0x1]
    %v159 = vperm.slane %v157, 0
    %161 = vmatpush.msra.mxu0 %v156
    %162 = vmatpush.msra.mxu0 %v155
    %163 = vmatpush.msra.mxu0 %v154
    %164 = vmatpush.msra.mxu0 %v153
    %165 = vmatpush.msra.mxu0 %v152
    %166 = vmatpush.msra.mxu0 %v151
    %167 = vmatpush.msra.mxu0 %v150
    %168 = vmatpush.msra.mxu0 %v149
    %169 = vmatpush.msra.mxu0 %v148
    %170 = vmatpush.msra.mxu0 %v147
    %171 = vmatpush.msra.mxu0 %v146
    %172 = vmatpush.msra.mxu0 %v145
    %173 = vmatpush.msra.mxu0 %v144
    %174 = vmatpush.msra.mxu0 %v143
    %175 = vmatpush.msra.mxu0 %v142
    %176 = vmatpush.msra.mxu0 %v141
    %177 = vmatmul.f32.gmra.mxu0 %v140
    %v178 = vpop.f32.mrf.mxu0
    %v179 = vadd.f32 %v159, %v178
    %180 = vdwg.mxu0
    %v181 = vmax.f32 %v179, 0.0
    %v182 = vld [vmem:[#allocation5 + $0x18] sm:$0xff]
    %v183 = vld [vmem:[#allocation5 + $0x38] sm:$0xff]
    %v184 = vld [vmem:[#allocation5 + $0x58] sm:$0xff]
    %v185 = vld [vmem:[#allocation5 + $0x78] sm:$0xff]
    %v186 = vld [vmem:[#allocation5 + $0x98] sm:$0xff]
    %v187 = vld [vmem:[#allocation5 + $0xb8] sm:$0xff]
    %v188 = vld [vmem:[#allocation5 + $0xd8] sm:$0xff]
    %v189 = vld [vmem:[#allocation5 + $0xf8] sm:$0xff]
    %v190 = vld [vmem:[#allocation5 + $0x118] sm:$0xff]
    %v191 = vld [vmem:[#allocation5 + $0x138] sm:$0xff]
    %v192 = vld [vmem:[#allocation5 + $0x158] sm:$0xff]
    %v193 = vld [vmem:[#allocation5 + $0x178] sm:$0xff]
    %v194 = vld [vmem:[#allocation5 + $0x198] sm:$0xff]
    %v195 = vld [vmem:[#allocation5 + $0x1b8] sm:$0xff]
    %v196 = vld [vmem:[#allocation5 + $0x1d8] sm:$0xff]
    %v197 = vld [vmem:[#allocation5 + $0x1f8] sm:$0xff]
    %v198 = vld [vmem:[#allocation7 + $0x3] sm:$0x1]
    %v200 = vperm.slane %v198, 0
    %202 = vmatpush.msra.mxu0 %v197
    %203 = vmatpush.msra.mxu0 %v196
    %204 = vmatpush.msra.mxu0 %v195
    %205 = vmatpush.msra.mxu0 %v194
    %206 = vmatpush.msra.mxu0 %v193
    %207 = vmatpush.msra.mxu0 %v192
    %208 = vmatpush.msra.mxu0 %v191
    %209 = vmatpush.msra.mxu0 %v190
    %210 = vmatpush.msra.mxu0 %v189
    %211 = vmatpush.msra.mxu0 %v188
    %212 = vmatpush.msra.mxu0 %v187
    %213 = vmatpush.msra.mxu0 %v186
    %214 = vmatpush.msra.mxu0 %v185
    %215 = vmatpush.msra.mxu0 %v184
    %216 = vmatpush.msra.mxu0 %v183
    %217 = vmatpush.msra.mxu0 %v182
    %218 = vmatmul.f32.gmra.mxu0 %v181
    %v219 = vpop.f32.mrf.mxu0
    %v220 = vadd.f32 %v200, %v219
    %221 = vdwg.mxu0
    %v222 = vlaneseq
    %v223 = vand.u32 %v222, 127
    %vm224 = vcmp.lt.s32.totalorder %v223, 4
    %v225 = vsel %vm224, %v220, -1e+30
    %226 = vmax.xlane.f32.xlu0 %v225
    %v227 = vpop.xlane.xlu0 %226
    %v228 = vsub.f32 %v225, %v227
    %v229 = vmul.f32 %v228, 1.442695
    %v230 = vpow.pop %v229
    %v231 = vsel %vm224, %v230, 0.0
    %232 = vadd.xlane.f32.xlu0 %v231
    %v233 = vpop.xlane.xlu0 %232
    %v234 = vrcp.pop %v233
    %v235 = vmul.f32 %v231, %v234
    %236 = vst [vmem:[#allocation8] sm:$0xff] %v235
    // Predicated region
    $region26: #{tpu_custom_call.1} parent=1 // pred_check
      _
    $region27: #{tpu_custom_call.1} parent=1 // pred_check_branch
      %238 = sbr.rel (0) target = $region29
    $region28: #{tpu_custom_call.1} parent=1 // pred_region
      %240 = vsyncadd [#allocation4], 0
      %s242 = sshll.u32 [#allocation8], 4
      %s243 = int_to_ptr.vmem [resolvable:$true] %s242
      %s244 = sshll.u32 %s3, 4
      %s245 = int_to_ptr.hbm [resolvable:$true] %s244
      %247 = dma.vmem_to_hbm [thread:$0]  %s243, 128, %s245, [#allocation4]
    $region29: #{tpu_custom_call.1} parent=1 // pred_fallthru
      _
    // Predicated region
    $region30: #{tpu_custom_call.1} parent=1 // pred_check
      _
    $region31: #{tpu_custom_call.1} parent=1 // pred_check_branch
      %249 = sbr.rel (0) target = $region33
    $region32: #{tpu_custom_call.1} parent=1 // pred_region
      %251 = dma.done [#allocation4], 128
    $region33: #{tpu_custom_call.1} parent=1 // pred_fallthru
      _
    %252 = vsyncpa [#allocation3], 1
    %253 = vsyncpa [#allocation6], 1
    %254 = vsyncpa [#allocation4], 1

</llo_original>
